<compile_context>
chip_gen: v7x
topology: tpu7x:2x2x1
jax: 0.10.0
libtpu: 0.0.40
codegen_flags: <defaults>
</compile_context>

<pallas_src>
import functools

import numpy as np
import jax
import jax.numpy as jnp
from jax import lax
from jax.experimental import pallas as pl
from jax.experimental.pallas import tpu as pltpu

_LOG_2PI = 1.8378770664093453


def _mdn_head_kernel(w_ref, mu_ref, ltf_ref, tdiag_ref, tgt_ref, utgt_ref,
                     smean_ref, sstd_ref, out_ref, lw_ref, *, rho, mse_coef):
    B, C, _ = ltf_ref.shape
    D = tdiag_ref.shape[-1]

    w = w_ref[...]            # (B, C)
    mu = mu_ref[...]          # (B, D)
    tgt = tgt_ref[...]        # (B, D)
    utgt = utgt_ref[...]      # (B, D)
    smean = smean_ref[...]    # (1, D)
    sstd = sstd_ref[...]      # (1, D)

    # --- mixture: Lw^T = sum_c w[:, c] * scale_tril[:, c].T  (lane-dense, D*D lanes) ---
    ltf = ltf_ref[...]                                   # (B, C, D*D)
    lwT = w[:, 0:1] * ltf[:, 0, :]
    for c in range(1, C):
        lwT = lwT + w[:, c:c + 1] * ltf[:, c, :]
    lw_ref[...] = lwT                                    # row i of lw_ref == column i of Lw

    # --- mixed diagonal, reused for both the solve and the log-det ---
    tdg = tdiag_ref[...]                                 # (B, C, D)
    diag = w[:, 0:1] * tdg[:, 0, :]
    for c in range(1, C):
        diag = diag + w[:, c:c + 1] * tdg[:, c, :]
    inv_diag = pl.reciprocal(diag, approx=False)                        # (B, D), off the chain
    half_log_det = jnp.sum(jnp.log(diag), axis=-1, keepdims=True)       # (B, 1)

    # --- column-oriented forward substitution: solve Lw @ z = (tgt - mu) ---
    # After step i, r[j] (j > i) holds diff[j] - sum_{k<=i} Lw[j,k] * z[k]; rows <= i are
    # never read again, so only the lower triangle of Lw ever influences the result
    # (matching torch.linalg.solve_triangular(..., upper=False)).
    r = tgt - mu                                                        # (B, D)
    maha = jnp.zeros((B, 1), jnp.float32)
    for i in range(D):
        z_i = r[:, i:i + 1] * inv_diag[:, i:i + 1]                      # (B, 1)
        maha = maha + z_i * z_i
        if i < D - 1:
            col_i = lw_ref[:, i * D:(i + 1) * D]                        # (B, D) = Lw[:, :, i]
            r = r - col_i * z_i                                         # VPU axpy

    c0 = jnp.float32(D * _LOG_2PI)
    log_prob = -0.5 * (c0 + maha) - half_log_det                        # (B, 1)
    nll = jnp.sum(-log_prob, axis=(0, 1), keepdims=True) / jnp.float32(B)   # (1, 1)

    # --- mse_loss = MSE(scaler.inverse_transform(mu), unscaled_target) ---
    predict = mu * sstd + smean                                         # (B, D)
    sq = (predict - utgt) ** 2
    mse = jnp.sum(sq, axis=(0, 1), keepdims=True) / jnp.float32(B * D)  # (1, 1)

    # --- fused total loss (reg_loss is identically 0 in the reference forward) ---
    loss = jnp.float32(rho) * nll + jnp.float32(mse_coef) * mse         # (1, 1)

    lane = lax.broadcasted_iota(jnp.int32, (1, 128), 1)
    out = jnp.where(lane == 0, loss, 0.0)
    out = jnp.where(lane == 1, nll, out)
    out = jnp.where(lane == 3, mse, out)
    out_ref[...] = out          # lanes: [loss, nll, reg(=0), mse, 0, ...]


def cholesky_mdn_head_forward(w, mu, scale_tril, target, u_target,
                              scaler_mean, scaler_std,
                              rho=0.1, reg_coef=0.1, mse_coef=0.1):
    B, C, D, _ = scale_tril.shape
    scale_tril = scale_tril.astype(jnp.float32)

    # Transposed+flattened factors (row i == column i of each L) and per-component diagonals.
    ltf = jnp.swapaxes(scale_tril, -1, -2).reshape(B, C, D * D)
    tdiag = jnp.diagonal(scale_tril, axis1=-2, axis2=-1)                # (B, C, D)

    vmem = pl.BlockSpec(memory_space=pltpu.MemorySpace.VMEM)
    kernel = functools.partial(_mdn_head_kernel,
                               rho=float(rho), mse_coef=float(mse_coef))
    out = pl.pallas_call(
        kernel,
        out_shape=jax.ShapeDtypeStruct((1, 128), jnp.float32),
        in_specs=[vmem] * 8,
        out_specs=vmem,
        scratch_shapes=[pltpu.VMEM((B, D * D), jnp.float32)],
    )(w.astype(jnp.float32),
      mu.astype(jnp.float32),
      ltf,
      tdiag.astype(jnp.float32),
      target.reshape(B, -1).astype(jnp.float32),
      u_target.reshape(B, -1).astype(jnp.float32),
      scaler_mean.reshape(1, -1).astype(jnp.float32),
      scaler_std.reshape(1, -1).astype(jnp.float32))

    loss = out[0, 0]
    nll_loss = out[0, 1]
    reg_loss = jnp.float32(0.0)     # reg_loss is identically 0 in the reference forward
    mse_loss = out[0, 3]
    return loss, nll_loss, reg_loss, mse_loss


if __name__ == "__main__":
    key = jax.random.PRNGKey(0)
    # n_components=4, n_vars=16 (n_rank unused by the Cholesky head), batch=2
    B, C, D = 2, 4, 16
    k1, k2, k3, k4, k5 = jax.random.split(key, 5)

    # deterministic "features" dict contents
    w = jax.nn.softmax(jax.random.normal(k1, (B, C)), axis=-1).astype(jnp.float32)
    mu = jax.random.normal(k2, (B, D), dtype=jnp.float32)

    raw = jax.random.normal(k3, (B, C, D, D), dtype=jnp.float32) * 0.1
    strict_lower = jnp.tril(raw, k=-1)
    diag = (jnp.eye(D, dtype=jnp.float32)[None, None]
            * (1.0 + 0.1 * jnp.arange(C, dtype=jnp.float32))[None, :, None, None])
    scale_tril = strict_lower + diag          # lower-triangular, positive diagonal

    target = jax.random.normal(k4, (B, D), dtype=jnp.float32)      # features['target']
    u_target = jax.random.normal(k5, (B, D), dtype=jnp.float32)    # features['unscaled_target']

    # deterministic StandardScaler-like parameters (features['scaler'])
    scaler_mean = jnp.linspace(-1.0, 1.0, D, dtype=jnp.float32)
    scaler_std = jnp.linspace(0.5, 2.0, D, dtype=jnp.float32)

    out = cholesky_mdn_head_forward(w, mu, scale_tril, target, u_target,
                                    scaler_mean, scaler_std,
                                    rho=0.1, reg_coef=0.1, mse_coef=0.1)
    out = jax.block_until_ready(out)
    loss, nll_loss, reg_loss, mse_loss = out

    # pure-JAX reference check (same math as torch MultivariateNormal + MSELoss)
    Lw_mat = jnp.einsum('bc,bcij->bij', w, scale_tril)
    diff = target.reshape(B, -1) - mu
    z = jax.scipy.linalg.solve_triangular(Lw_mat, diff[..., None], lower=True)[..., 0]
    maha = jnp.sum(z * z, axis=-1)
    hld = jnp.sum(jnp.log(jnp.diagonal(Lw_mat, axis1=-2, axis2=-1)), axis=-1)
    log_prob = -0.5 * (D * _LOG_2PI + maha) - hld
    nll_ref = -jnp.mean(log_prob)
    pred = mu * scaler_std[None, :] + scaler_mean[None, :]
    mse_ref = jnp.mean((pred - u_target) ** 2)
    loss_ref = 0.1 * nll_ref + 0.1 * mse_ref

    np.testing.assert_allclose(np.array(nll_loss), np.array(nll_ref), rtol=1e-3, atol=1e-4)
    np.testing.assert_allclose(np.array(mse_loss), np.array(mse_ref), rtol=1e-3, atol=1e-4)
    np.testing.assert_allclose(np.array(loss), np.array(loss_ref), rtol=1e-3, atol=1e-4)

    print("KERNEL_OK")
</pallas_src>

<mosaic_0001>
module attributes {stable_mosaic.version = 11 : i64} {
  func.func @_mdn_head_kernel(%arg0: memref<2x4xf32, #tpu.memory_space<vmem>>, %arg1: memref<2x16xf32, #tpu.memory_space<vmem>>, %arg2: memref<2x4x256xf32, #tpu.memory_space<vmem>>, %arg3: memref<2x4x16xf32, #tpu.memory_space<vmem>>, %arg4: memref<2x16xf32, #tpu.memory_space<vmem>>, %arg5: memref<2x16xf32, #tpu.memory_space<vmem>>, %arg6: memref<1x16xf32, #tpu.memory_space<vmem>>, %arg7: memref<1x16xf32, #tpu.memory_space<vmem>>, %arg8: memref<1x128xf32, #tpu.memory_space<vmem>>, %arg9: memref<2x256xf32, #tpu.memory_space<vmem>>) attributes {dimension_semantics = [], scalar_prefetch = 0 : i64, scratch_operands = 1 : i64, tpu.core_type = #tpu.core_type<tc>} {
    %c0 = arith.constant 0 : index
    %c0_0 = arith.constant 0 : index
    %0 = vector.load %arg0[%c0, %c0_0] : memref<2x4xf32, #tpu.memory_space<vmem>>, vector<2x4xf32>
    %c0_1 = arith.constant 0 : index
    %c0_2 = arith.constant 0 : index
    %1 = vector.load %arg1[%c0_1, %c0_2] : memref<2x16xf32, #tpu.memory_space<vmem>>, vector<2x16xf32>
    %c0_3 = arith.constant 0 : index
    %c0_4 = arith.constant 0 : index
    %2 = vector.load %arg4[%c0_3, %c0_4] : memref<2x16xf32, #tpu.memory_space<vmem>>, vector<2x16xf32>
    %c0_5 = arith.constant 0 : index
    %c0_6 = arith.constant 0 : index
    %3 = vector.load %arg5[%c0_5, %c0_6] : memref<2x16xf32, #tpu.memory_space<vmem>>, vector<2x16xf32>
    %c0_7 = arith.constant 0 : index
    %c0_8 = arith.constant 0 : index
    %4 = vector.load %arg6[%c0_7, %c0_8] : memref<1x16xf32, #tpu.memory_space<vmem>>, vector<1x16xf32>
    %c0_9 = arith.constant 0 : index
    %c0_10 = arith.constant 0 : index
    %5 = vector.load %arg7[%c0_9, %c0_10] : memref<1x16xf32, #tpu.memory_space<vmem>>, vector<1x16xf32>
    %c0_11 = arith.constant 0 : index
    %c0_12 = arith.constant 0 : index
    %c0_13 = arith.constant 0 : index
    %6 = vector.load %arg2[%c0_11, %c0_12, %c0_13] : memref<2x4x256xf32, #tpu.memory_space<vmem>>, vector<2x4x256xf32>
    %7 = vector.extract_strided_slice %0 {offsets = [0, 0], sizes = [2, 1], strides = [1, 1]} : vector<2x4xf32> to vector<2x1xf32>
    %8 = vector.extract_strided_slice %6 {offsets = [0, 0, 0], sizes = [2, 1, 256], strides = [1, 1, 1]} : vector<2x4x256xf32> to vector<2x1x256xf32>
    %9 = vector.shape_cast %8 : vector<2x1x256xf32> to vector<2x256xf32>
    %10 = vector.broadcast %7 : vector<2x1xf32> to vector<2x256xf32>
    %11 = arith.mulf %10, %9 : vector<2x256xf32>
    %12 = vector.extract_strided_slice %0 {offsets = [0, 1], sizes = [2, 1], strides = [1, 1]} : vector<2x4xf32> to vector<2x1xf32>
    %13 = vector.extract_strided_slice %6 {offsets = [0, 1, 0], sizes = [2, 1, 256], strides = [1, 1, 1]} : vector<2x4x256xf32> to vector<2x1x256xf32>
    %14 = vector.shape_cast %13 : vector<2x1x256xf32> to vector<2x256xf32>
    %15 = vector.broadcast %12 : vector<2x1xf32> to vector<2x256xf32>
    %16 = arith.mulf %15, %14 : vector<2x256xf32>
    %17 = arith.addf %11, %16 : vector<2x256xf32>
    %18 = vector.extract_strided_slice %0 {offsets = [0, 2], sizes = [2, 1], strides = [1, 1]} : vector<2x4xf32> to vector<2x1xf32>
    %19 = vector.extract_strided_slice %6 {offsets = [0, 2, 0], sizes = [2, 1, 256], strides = [1, 1, 1]} : vector<2x4x256xf32> to vector<2x1x256xf32>
    %20 = vector.shape_cast %19 : vector<2x1x256xf32> to vector<2x256xf32>
    %21 = vector.broadcast %18 : vector<2x1xf32> to vector<2x256xf32>
    %22 = arith.mulf %21, %20 : vector<2x256xf32>
    %23 = arith.addf %17, %22 : vector<2x256xf32>
    %24 = vector.extract_strided_slice %0 {offsets = [0, 3], sizes = [2, 1], strides = [1, 1]} : vector<2x4xf32> to vector<2x1xf32>
    %25 = vector.extract_strided_slice %6 {offsets = [0, 3, 0], sizes = [2, 1, 256], strides = [1, 1, 1]} : vector<2x4x256xf32> to vector<2x1x256xf32>
    %26 = vector.shape_cast %25 : vector<2x1x256xf32> to vector<2x256xf32>
    %27 = vector.broadcast %24 : vector<2x1xf32> to vector<2x256xf32>
    %28 = arith.mulf %27, %26 : vector<2x256xf32>
    %29 = arith.addf %23, %28 : vector<2x256xf32>
    %c0_14 = arith.constant 0 : index
    %c0_15 = arith.constant 0 : index
    %30 = vector.load %arg9[%c0_14, %c0_15] : memref<2x256xf32, #tpu.memory_space<vmem>>, vector<2x256xf32>
    tpu.vector_store %arg9[%c0_14, %c0_15], %29 {strides = array<i32>} : memref<2x256xf32, #tpu.memory_space<vmem>>, vector<2x256xf32>,
    %c0_16 = arith.constant 0 : index
    %c0_17 = arith.constant 0 : index
    %c0_18 = arith.constant 0 : index
    %31 = vector.load %arg3[%c0_16, %c0_17, %c0_18] : memref<2x4x16xf32, #tpu.memory_space<vmem>>, vector<2x4x16xf32>
    %32 = vector.extract_strided_slice %0 {offsets = [0, 0], sizes = [2, 1], strides = [1, 1]} : vector<2x4xf32> to vector<2x1xf32>
    %33 = vector.extract_strided_slice %31 {offsets = [0, 0, 0], sizes = [2, 1, 16], strides = [1, 1, 1]} : vector<2x4x16xf32> to vector<2x1x16xf32>
    %34 = vector.shape_cast %33 : vector<2x1x16xf32> to vector<2x16xf32>
    %35 = vector.broadcast %32 : vector<2x1xf32> to vector<2x16xf32>
    %36 = arith.mulf %35, %34 : vector<2x16xf32>
    %37 = vector.extract_strided_slice %0 {offsets = [0, 1], sizes = [2, 1], strides = [1, 1]} : vector<2x4xf32> to vector<2x1xf32>
    %38 = vector.extract_strided_slice %31 {offsets = [0, 1, 0], sizes = [2, 1, 16], strides = [1, 1, 1]} : vector<2x4x16xf32> to vector<2x1x16xf32>
    %39 = vector.shape_cast %38 : vector<2x1x16xf32> to vector<2x16xf32>
    %40 = vector.broadcast %37 : vector<2x1xf32> to vector<2x16xf32>
    %41 = arith.mulf %40, %39 : vector<2x16xf32>
    %42 = arith.addf %36, %41 : vector<2x16xf32>
    %43 = vector.extract_strided_slice %0 {offsets = [0, 2], sizes = [2, 1], strides = [1, 1]} : vector<2x4xf32> to vector<2x1xf32>
    %44 = vector.extract_strided_slice %31 {offsets = [0, 2, 0], sizes = [2, 1, 16], strides = [1, 1, 1]} : vector<2x4x16xf32> to vector<2x1x16xf32>
    %45 = vector.shape_cast %44 : vector<2x1x16xf32> to vector<2x16xf32>
    %46 = vector.broadcast %43 : vector<2x1xf32> to vector<2x16xf32>
    %47 = arith.mulf %46, %45 : vector<2x16xf32>
    %48 = arith.addf %42, %47 : vector<2x16xf32>
    %49 = vector.extract_strided_slice %0 {offsets = [0, 3], sizes = [2, 1], strides = [1, 1]} : vector<2x4xf32> to vector<2x1xf32>
    %50 = vector.extract_strided_slice %31 {offsets = [0, 3, 0], sizes = [2, 1, 16], strides = [1, 1, 1]} : vector<2x4x16xf32> to vector<2x1x16xf32>
    %51 = vector.shape_cast %50 : vector<2x1x16xf32> to vector<2x16xf32>
    %52 = vector.broadcast %49 : vector<2x1xf32> to vector<2x16xf32>
    %53 = arith.mulf %52, %51 : vector<2x16xf32>
    %54 = arith.addf %48, %53 : vector<2x16xf32>
    %55 = tpu.reciprocal %54 : vector<2x16xf32> -> vector<2x16xf32>
    %56 = math.log %54 : vector<2x16xf32>
    %cst = arith.constant dense<0.000000e+00> : vector<2xf32>
    %57 = vector.multi_reduction <add>, %56, %cst [1] : vector<2x16xf32> to vector<2xf32>
    %58 = vector.shape_cast %57 : vector<2xf32> to vector<2x1xf32>
    %59 = arith.subf %2, %1 : vector<2x16xf32>
    %cst_19 = arith.constant 0.000000e+00 : f32
    %60 = vector.broadcast %cst_19 : f32 to vector<2x1xf32>
    %61 = vector.extract_strided_slice %59 {offsets = [0, 0], sizes = [2, 1], strides = [1, 1]} : vector<2x16xf32> to vector<2x1xf32>
    %62 = vector.extract_strided_slice %55 {offsets = [0, 0], sizes = [2, 1], strides = [1, 1]} : vector<2x16xf32> to vector<2x1xf32>
    %63 = arith.mulf %61, %62 : vector<2x1xf32>
    %64 = arith.mulf %63, %63 : vector<2x1xf32>
    %65 = arith.addf %60, %64 : vector<2x1xf32>
    %c0_20 = arith.constant 0 : index
    %c0_21 = arith.constant 0 : index
    %66 = vector.load %arg9[%c0_20, %c0_21] : memref<2x256xf32, #tpu.memory_space<vmem>>, vector<2x16xf32>
    %67 = vector.broadcast %63 : vector<2x1xf32> to vector<2x16xf32>
    %68 = arith.mulf %66, %67 : vector<2x16xf32>
    %69 = arith.subf %59, %68 : vector<2x16xf32>
    %70 = vector.extract_strided_slice %69 {offsets = [0, 1], sizes = [2, 1], strides = [1, 1]} : vector<2x16xf32> to vector<2x1xf32>
    %71 = vector.extract_strided_slice %55 {offsets = [0, 1], sizes = [2, 1], strides = [1, 1]} : vector<2x16xf32> to vector<2x1xf32>
    %72 = arith.mulf %70, %71 : vector<2x1xf32>
    %73 = arith.mulf %72, %72 : vector<2x1xf32>
    %74 = arith.addf %65, %73 : vector<2x1xf32>
    %c0_22 = arith.constant 0 : index
    %c16 = arith.constant 16 : index
    %75 = vector.load %arg9[%c0_22, %c16] : memref<2x256xf32, #tpu.memory_space<vmem>>, vector<2x16xf32>
    %76 = vector.broadcast %72 : vector<2x1xf32> to vector<2x16xf32>
    %77 = arith.mulf %75, %76 : vector<2x16xf32>
    %78 = arith.subf %69, %77 : vector<2x16xf32>
    %79 = vector.extract_strided_slice %78 {offsets = [0, 2], sizes = [2, 1], strides = [1, 1]} : vector<2x16xf32> to vector<2x1xf32>
    %80 = vector.extract_strided_slice %55 {offsets = [0, 2], sizes = [2, 1], strides = [1, 1]} : vector<2x16xf32> to vector<2x1xf32>
    %81 = arith.mulf %79, %80 : vector<2x1xf32>
    %82 = arith.mulf %81, %81 : vector<2x1xf32>
    %83 = arith.addf %74, %82 : vector<2x1xf32>
    %c0_23 = arith.constant 0 : index
    %c32 = arith.constant 32 : index
    %84 = vector.load %arg9[%c0_23, %c32] : memref<2x256xf32, #tpu.memory_space<vmem>>, vector<2x16xf32>
    %85 = vector.broadcast %81 : vector<2x1xf32> to vector<2x16xf32>
    %86 = arith.mulf %84, %85 : vector<2x16xf32>
    %87 = arith.subf %78, %86 : vector<2x16xf32>
    %88 = vector.extract_strided_slice %87 {offsets = [0, 3], sizes = [2, 1], strides = [1, 1]} : vector<2x16xf32> to vector<2x1xf32>
    %89 = vector.extract_strided_slice %55 {offsets = [0, 3], sizes = [2, 1], strides = [1, 1]} : vector<2x16xf32> to vector<2x1xf32>
    %90 = arith.mulf %88, %89 : vector<2x1xf32>
    %91 = arith.mulf %90, %90 : vector<2x1xf32>
    %92 = arith.addf %83, %91 : vector<2x1xf32>
    %c0_24 = arith.constant 0 : index
    %c48 = arith.constant 48 : index
    %93 = vector.load %arg9[%c0_24, %c48] : memref<2x256xf32, #tpu.memory_space<vmem>>, vector<2x16xf32>
    %94 = vector.broadcast %90 : vector<2x1xf32> to vector<2x16xf32>
    %95 = arith.mulf %93, %94 : vector<2x16xf32>
    %96 = arith.subf %87, %95 : vector<2x16xf32>
    %97 = vector.extract_strided_slice %96 {offsets = [0, 4], sizes = [2, 1], strides = [1, 1]} : vector<2x16xf32> to vector<2x1xf32>
    %98 = vector.extract_strided_slice %55 {offsets = [0, 4], sizes = [2, 1], strides = [1, 1]} : vector<2x16xf32> to vector<2x1xf32>
    %99 = arith.mulf %97, %98 : vector<2x1xf32>
    %100 = arith.mulf %99, %99 : vector<2x1xf32>
    %101 = arith.addf %92, %100 : vector<2x1xf32>
    %c0_25 = arith.constant 0 : index
    %c64 = arith.constant 64 : index
    %102 = vector.load %arg9[%c0_25, %c64] : memref<2x256xf32, #tpu.memory_space<vmem>>, vector<2x16xf32>
    %103 = vector.broadcast %99 : vector<2x1xf32> to vector<2x16xf32>
    %104 = arith.mulf %102, %103 : vector<2x16xf32>
    %105 = arith.subf %96, %104 : vector<2x16xf32>
    %106 = vector.extract_strided_slice %105 {offsets = [0, 5], sizes = [2, 1], strides = [1, 1]} : vector<2x16xf32> to vector<2x1xf32>
    %107 = vector.extract_strided_slice %55 {offsets = [0, 5], sizes = [2, 1], strides = [1, 1]} : vector<2x16xf32> to vector<2x1xf32>
    %108 = arith.mulf %106, %107 : vector<2x1xf32>
    %109 = arith.mulf %108, %108 : vector<2x1xf32>
    %110 = arith.addf %101, %109 : vector<2x1xf32>
    %c0_26 = arith.constant 0 : index
    %c80 = arith.constant 80 : index
    %111 = vector.load %arg9[%c0_26, %c80] : memref<2x256xf32, #tpu.memory_space<vmem>>, vector<2x16xf32>
    %112 = vector.broadcast %108 : vector<2x1xf32> to vector<2x16xf32>
    %113 = arith.mulf %111, %112 : vector<2x16xf32>
    %114 = arith.subf %105, %113 : vector<2x16xf32>
    %115 = vector.extract_strided_slice %114 {offsets = [0, 6], sizes = [2, 1], strides = [1, 1]} : vector<2x16xf32> to vector<2x1xf32>
    %116 = vector.extract_strided_slice %55 {offsets = [0, 6], sizes = [2, 1], strides = [1, 1]} : vector<2x16xf32> to vector<2x1xf32>
    %117 = arith.mulf %115, %116 : vector<2x1xf32>
    %118 = arith.mulf %117, %117 : vector<2x1xf32>
    %119 = arith.addf %110, %118 : vector<2x1xf32>
    %c0_27 = arith.constant 0 : index
    %c96 = arith.constant 96 : index
    %120 = vector.load %arg9[%c0_27, %c96] : memref<2x256xf32, #tpu.memory_space<vmem>>, vector<2x16xf32>
    %121 = vector.broadcast %117 : vector<2x1xf32> to vector<2x16xf32>
    %122 = arith.mulf %120, %121 : vector<2x16xf32>
    %123 = arith.subf %114, %122 : vector<2x16xf32>
    %124 = vector.extract_strided_slice %123 {offsets = [0, 7], sizes = [2, 1], strides = [1, 1]} : vector<2x16xf32> to vector<2x1xf32>
    %125 = vector.extract_strided_slice %55 {offsets = [0, 7], sizes = [2, 1], strides = [1, 1]} : vector<2x16xf32> to vector<2x1xf32>
    %126 = arith.mulf %124, %125 : vector<2x1xf32>
    %127 = arith.mulf %126, %126 : vector<2x1xf32>
    %128 = arith.addf %119, %127 : vector<2x1xf32>
    %c0_28 = arith.constant 0 : index
    %c112 = arith.constant 112 : index
    %129 = vector.load %arg9[%c0_28, %c112] : memref<2x256xf32, #tpu.memory_space<vmem>>, vector<2x16xf32>
    %130 = vector.broadcast %126 : vector<2x1xf32> to vector<2x16xf32>
    %131 = arith.mulf %129, %130 : vector<2x16xf32>
    %132 = arith.subf %123, %131 : vector<2x16xf32>
    %133 = vector.extract_strided_slice %132 {offsets = [0, 8], sizes = [2, 1], strides = [1, 1]} : vector<2x16xf32> to vector<2x1xf32>
    %134 = vector.extract_strided_slice %55 {offsets = [0, 8], sizes = [2, 1], strides = [1, 1]} : vector<2x16xf32> to vector<2x1xf32>
    %135 = arith.mulf %133, %134 : vector<2x1xf32>
    %136 = arith.mulf %135, %135 : vector<2x1xf32>
    %137 = arith.addf %128, %136 : vector<2x1xf32>
    %c0_29 = arith.constant 0 : index
    %c128 = arith.constant 128 : index
    %138 = vector.load %arg9[%c0_29, %c128] : memref<2x256xf32, #tpu.memory_space<vmem>>, vector<2x16xf32>
    %139 = vector.broadcast %135 : vector<2x1xf32> to vector<2x16xf32>
    %140 = arith.mulf %138, %139 : vector<2x16xf32>
    %141 = arith.subf %132, %140 : vector<2x16xf32>
    %142 = vector.extract_strided_slice %141 {offsets = [0, 9], sizes = [2, 1], strides = [1, 1]} : vector<2x16xf32> to vector<2x1xf32>
    %143 = vector.extract_strided_slice %55 {offsets = [0, 9], sizes = [2, 1], strides = [1, 1]} : vector<2x16xf32> to vector<2x1xf32>
    %144 = arith.mulf %142, %143 : vector<2x1xf32>
    %145 = arith.mulf %144, %144 : vector<2x1xf32>
    %146 = arith.addf %137, %145 : vector<2x1xf32>
    %c0_30 = arith.constant 0 : index
    %c144 = arith.constant 144 : index
    %147 = vector.load %arg9[%c0_30, %c144] : memref<2x256xf32, #tpu.memory_space<vmem>>, vector<2x16xf32>
    %148 = vector.broadcast %144 : vector<2x1xf32> to vector<2x16xf32>
    %149 = arith.mulf %147, %148 : vector<2x16xf32>
    %150 = arith.subf %141, %149 : vector<2x16xf32>
    %151 = vector.extract_strided_slice %150 {offsets = [0, 10], sizes = [2, 1], strides = [1, 1]} : vector<2x16xf32> to vector<2x1xf32>
    %152 = vector.extract_strided_slice %55 {offsets = [0, 10], sizes = [2, 1], strides = [1, 1]} : vector<2x16xf32> to vector<2x1xf32>
    %153 = arith.mulf %151, %152 : vector<2x1xf32>
    %154 = arith.mulf %153, %153 : vector<2x1xf32>
    %155 = arith.addf %146, %154 : vector<2x1xf32>
    %c0_31 = arith.constant 0 : index
    %c160 = arith.constant 160 : index
    %156 = vector.load %arg9[%c0_31, %c160] : memref<2x256xf32, #tpu.memory_space<vmem>>, vector<2x16xf32>
    %157 = vector.broadcast %153 : vector<2x1xf32> to vector<2x16xf32>
    %158 = arith.mulf %156, %157 : vector<2x16xf32>
    %159 = arith.subf %150, %158 : vector<2x16xf32>
    %160 = vector.extract_strided_slice %159 {offsets = [0, 11], sizes = [2, 1], strides = [1, 1]} : vector<2x16xf32> to vector<2x1xf32>
    %161 = vector.extract_strided_slice %55 {offsets = [0, 11], sizes = [2, 1], strides = [1, 1]} : vector<2x16xf32> to vector<2x1xf32>
    %162 = arith.mulf %160, %161 : vector<2x1xf32>
    %163 = arith.mulf %162, %162 : vector<2x1xf32>
    %164 = arith.addf %155, %163 : vector<2x1xf32>
    %c0_32 = arith.constant 0 : index
    %c176 = arith.constant 176 : index
    %165 = vector.load %arg9[%c0_32, %c176] : memref<2x256xf32, #tpu.memory_space<vmem>>, vector<2x16xf32>
    %166 = vector.broadcast %162 : vector<2x1xf32> to vector<2x16xf32>
    %167 = arith.mulf %165, %166 : vector<2x16xf32>
    %168 = arith.subf %159, %167 : vector<2x16xf32>
    %169 = vector.extract_strided_slice %168 {offsets = [0, 12], sizes = [2, 1], strides = [1, 1]} : vector<2x16xf32> to vector<2x1xf32>
    %170 = vector.extract_strided_slice %55 {offsets = [0, 12], sizes = [2, 1], strides = [1, 1]} : vector<2x16xf32> to vector<2x1xf32>
    %171 = arith.mulf %169, %170 : vector<2x1xf32>
    %172 = arith.mulf %171, %171 : vector<2x1xf32>
    %173 = arith.addf %164, %172 : vector<2x1xf32>
    %c0_33 = arith.constant 0 : index
    %c192 = arith.constant 192 : index
    %174 = vector.load %arg9[%c0_33, %c192] : memref<2x256xf32, #tpu.memory_space<vmem>>, vector<2x16xf32>
    %175 = vector.broadcast %171 : vector<2x1xf32> to vector<2x16xf32>
    %176 = arith.mulf %174, %175 : vector<2x16xf32>
    %177 = arith.subf %168, %176 : vector<2x16xf32>
    %178 = vector.extract_strided_slice %177 {offsets = [0, 13], sizes = [2, 1], strides = [1, 1]} : vector<2x16xf32> to vector<2x1xf32>
    %179 = vector.extract_strided_slice %55 {offsets = [0, 13], sizes = [2, 1], strides = [1, 1]} : vector<2x16xf32> to vector<2x1xf32>
    %180 = arith.mulf %178, %179 : vector<2x1xf32>
    %181 = arith.mulf %180, %180 : vector<2x1xf32>
    %182 = arith.addf %173, %181 : vector<2x1xf32>
    %c0_34 = arith.constant 0 : index
    %c208 = arith.constant 208 : index
    %183 = vector.load %arg9[%c0_34, %c208] : memref<2x256xf32, #tpu.memory_space<vmem>>, vector<2x16xf32>
    %184 = vector.broadcast %180 : vector<2x1xf32> to vector<2x16xf32>
    %185 = arith.mulf %183, %184 : vector<2x16xf32>
    %186 = arith.subf %177, %185 : vector<2x16xf32>
    %187 = vector.extract_strided_slice %186 {offsets = [0, 14], sizes = [2, 1], strides = [1, 1]} : vector<2x16xf32> to vector<2x1xf32>
    %188 = vector.extract_strided_slice %55 {offsets = [0, 14], sizes = [2, 1], strides = [1, 1]} : vector<2x16xf32> to vector<2x1xf32>
    %189 = arith.mulf %187, %188 : vector<2x1xf32>
    %190 = arith.mulf %189, %189 : vector<2x1xf32>
    %191 = arith.addf %182, %190 : vector<2x1xf32>
    %c0_35 = arith.constant 0 : index
    %c224 = arith.constant 224 : index
    %192 = vector.load %arg9[%c0_35, %c224] : memref<2x256xf32, #tpu.memory_space<vmem>>, vector<2x16xf32>
    %193 = vector.broadcast %189 : vector<2x1xf32> to vector<2x16xf32>
    %194 = arith.mulf %192, %193 : vector<2x16xf32>
    %195 = arith.subf %186, %194 : vector<2x16xf32>
    %196 = vector.extract_strided_slice %195 {offsets = [0, 15], sizes = [2, 1], strides = [1, 1]} : vector<2x16xf32> to vector<2x1xf32>
    %197 = vector.extract_strided_slice %55 {offsets = [0, 15], sizes = [2, 1], strides = [1, 1]} : vector<2x16xf32> to vector<2x1xf32>
    %198 = arith.mulf %196, %197 : vector<2x1xf32>
    %199 = arith.mulf %198, %198 : vector<2x1xf32>
    %200 = arith.addf %191, %199 : vector<2x1xf32>
    %cst_36 = arith.constant 29.4060326 : f32
    %201 = vector.broadcast %cst_36 : f32 to vector<2x1xf32>
    %202 = arith.addf %201, %200 : vector<2x1xf32>
    %cst_37 = arith.constant -5.000000e-01 : f32
    %203 = vector.broadcast %cst_37 : f32 to vector<2x1xf32>
    %204 = arith.mulf %203, %202 : vector<2x1xf32>
    %205 = arith.subf %204, %58 : vector<2x1xf32>
    %cst_38 = arith.constant 0.000000e+00 : f32
    %206 = vector.broadcast %cst_38 : f32 to vector<2x1xf32>
    %207 = arith.subf %206, %205 : vector<2x1xf32>
    %208 = vector.shape_cast %207 : vector<2x1xf32> to vector<1x2x1xf32>
    %cst_39 = arith.constant dense<0.000000e+00> : vector<1xf32>
    %209 = vector.multi_reduction <add>, %208, %cst_39 [1, 2] : vector<1x2x1xf32> to vector<1xf32>
    %210 = vector.shape_cast %209 : vector<1xf32> to vector<1x1x1xf32>
    %211 = vector.extract %210[0, 0, 0] : f32 from vector<1x1x1xf32>
    %212 = vector.broadcast %211 : f32 to vector<1x1xf32>
    %cst_40 = arith.constant 2.000000e+00 : f32
    %213 = vector.broadcast %cst_40 : f32 to vector<1x1xf32>
    %214 = arith.divf %212, %213 : vector<1x1xf32>
    %215 = vector.broadcast %5 : vector<1x16xf32> to vector<2x16xf32>
    %216 = arith.mulf %1, %215 : vector<2x16xf32>
    %217 = vector.broadcast %4 : vector<1x16xf32> to vector<2x16xf32>
    %218 = arith.addf %216, %217 : vector<2x16xf32>
    %219 = arith.subf %218, %3 : vector<2x16xf32>
    %220 = arith.mulf %219, %219 : vector<2x16xf32>
    %221 = vector.shape_cast %220 : vector<2x16xf32> to vector<1x2x16xf32>
    %cst_41 = arith.constant dense<0.000000e+00> : vector<1xf32>
    %222 = vector.multi_reduction <add>, %221, %cst_41 [1, 2] : vector<1x2x16xf32> to vector<1xf32>
    %223 = vector.shape_cast %222 : vector<1xf32> to vector<1x1x1xf32>
    %224 = vector.extract %223[0, 0, 0] : f32 from vector<1x1x1xf32>
    %225 = vector.broadcast %224 : f32 to vector<1x1xf32>
    %cst_42 = arith.constant 3.200000e+01 : f32
    %226 = vector.broadcast %cst_42 : f32 to vector<1x1xf32>
    %227 = arith.divf %225, %226 : vector<1x1xf32>
    %cst_43 = arith.constant 1.000000e-01 : f32
    %228 = vector.broadcast %cst_43 : f32 to vector<1x1xf32>
    %229 = arith.mulf %228, %214 : vector<1x1xf32>
    %cst_44 = arith.constant 1.000000e-01 : f32
    %230 = vector.broadcast %cst_44 : f32 to vector<1x1xf32>
    %231 = arith.mulf %230, %227 : vector<1x1xf32>
    %232 = arith.addf %229, %231 : vector<1x1xf32>
    %233 = tpu.iota {dimensions = array<i32: 1>} : vector<1x128xi32>
    %c0_i32 = arith.constant 0 : i32
    %234 = vector.broadcast %c0_i32 : i32 to vector<1x128xi32>
    %235 = arith.cmpi eq, %233, %234 : vector<1x128xi32>
    %cst_45 = arith.constant 0.000000e+00 : f32
    %236 = vector.shape_cast %232 : vector<1x1xf32> to vector<1x1xf32>
    %237 = vector.broadcast %236 : vector<1x1xf32> to vector<1x128xf32>
    %238 = vector.broadcast %cst_45 : f32 to vector<1x128xf32>
    %239 = arith.select %235, %237, %238 : vector<1x128xi1>, vector<1x128xf32>
    %c1_i32 = arith.constant 1 : i32
    %240 = vector.broadcast %c1_i32 : i32 to vector<1x128xi32>
    %241 = arith.cmpi eq, %233, %240 : vector<1x128xi32>
    %242 = vector.shape_cast %214 : vector<1x1xf32> to vector<1x1xf32>
    %243 = vector.broadcast %242 : vector<1x1xf32> to vector<1x128xf32>
    %244 = arith.select %241, %243, %239 : vector<1x128xi1>, vector<1x128xf32>
    %c3_i32 = arith.constant 3 : i32
    %245 = vector.broadcast %c3_i32 : i32 to vector<1x128xi32>
    %246 = arith.cmpi eq, %233, %245 : vector<1x128xi32>
    %247 = vector.shape_cast %227 : vector<1x1xf32> to vector<1x1xf32>
    %248 = vector.broadcast %247 : vector<1x1xf32> to vector<1x128xf32>
    %249 = arith.select %246, %248, %244 : vector<1x128xi1>, vector<1x128xf32>
    %c0_46 = arith.constant 0 : index
    %c0_47 = arith.constant 0 : index
    %250 = vector.load %arg8[%c0_46, %c0_47] : memref<1x128xf32, #tpu.memory_space<vmem>>, vector<1x128xf32>
    tpu.vector_store %arg8[%c0_46, %c0_47], %249 {strides = array<i32>} : memref<1x128xf32, #tpu.memory_space<vmem>>, vector<1x128xf32>,
    return
  }
}

</mosaic_0001>

<llo_original>
// kernel: tpu_custom_call.1
$region0: #{tpu_custom_call.1}
  #allocation0 [shape = 'u32[]', space=smem, size = 0x4, offset = 0x4, fixed_abs, tag = 'smem constant byte address 0x4 - core index']
  #allocation1 [shape = 'u32[144,128]{1,0:T(1,128)}', space=vmem, size = 0x12000, scoped, tag = 'internal scratch']
  #allocation2 [shape = 'f32[2,256]{1,0:T(2,128)}', space=vmem, size = 0x800, scoped, tag = 'scratch operand']
  %s0 = inlined_call_operand.hbm [shape: f32[2,4], index: 0, kind: input, shape index: {}]
  %s1 = inlined_call_operand.vmem [shape: f32[2,16], index: 1, kind: input, shape index: {}]
  %s2 = inlined_call_operand.hbm [shape: f32[2,4,256], index: 2, kind: input, shape index: {}]
  %s3 = inlined_call_operand.vmem [shape: f32[2,4,16], index: 3, kind: input, shape index: {}]
  %s4 = inlined_call_operand.vmem [shape: f32[2,16], index: 4, kind: input, shape index: {}]
  %s5 = inlined_call_operand.vmem [shape: f32[2,16], index: 5, kind: input, shape index: {}]
  %s6 = inlined_call_operand.vmem [shape: f32[1,16], index: 6, kind: input, shape index: {}]
  %s7 = inlined_call_operand.vmem [shape: f32[1,16], index: 7, kind: input, shape index: {}]
  %s8 = inlined_call_operand.hbm [shape: f32[1,128], index: 8, kind: output, shape index: {}]
  %s9 = sld [smem:[#allocation0]]
  $region50: #{tpu_custom_call.1} parent=0
    _
  %s11 = ssub.s32 1, %s9
  %s12 = scalar_select 0, %s11, %s9
  $region1: #{tpu_custom_call.1} parent=0
    #allocation3 [shape = 'u8[1024]{0}', space=vmem, size = 0x400, scoped, tag = 'input window, operand 0, single buffered']
    #allocation4 [shape = 's32[1]{0}', space=sflag, size = 0x4, scoped, tag = 'scoped memory for tpu_custom_call.1']
    #allocation5 [shape = 's32[1]{0}', space=sflag, size = 0x4, scoped, tag = 'scoped memory for tpu_custom_call.1']
    #allocation6 [shape = 'u8[8192]{0}', space=vmem, size = 0x2000, scoped, tag = 'input window, operand 2, single buffered']
    #allocation7 [shape = 's32[1]{0}', space=sflag, size = 0x4, scoped, tag = 'scoped memory for tpu_custom_call.1']
    #allocation8 [shape = 'u8[512]{0}', space=vmem, size = 0x400, scoped, tag = 'output window, operand 0, single buffered']
    %13 = vsyncpa [#allocation4], 0
    %14 = vsyncpa [#allocation7], 0
    %15 = vsyncpa [#allocation5], 0
    // Predicated region
    $region2: #{tpu_custom_call.1} parent=1 // pred_check
      _
    $region3: #{tpu_custom_call.1} parent=1 // pred_check_branch
      %17 = sbr.rel (0) target = $region5
    $region4: #{tpu_custom_call.1} parent=1 // pred_region
      %s19 = ssub.s32 32, 32
      %20 = vsyncadd [#allocation4], %s19
      %s22 = sshll.u32 [#allocation3], 4
      %s23 = int_to_ptr.vmem [resolvable:$true] %s22
      %25 = dma.hbm_to_vmem [thread:$0]  %s0, 32, %s23, [#allocation4]
    $region5: #{tpu_custom_call.1} parent=1 // pred_fallthru
      _
    // Predicated region
    $region6: #{tpu_custom_call.1} parent=1 // pred_check
      _
    $region7: #{tpu_custom_call.1} parent=1 // pred_check_branch
      %27 = sbr.rel (0) target = $region9
    $region8: #{tpu_custom_call.1} parent=1 // pred_region
      _
    $region9: #{tpu_custom_call.1} parent=1 // pred_fallthru
      _
    // Predicated region
    $region10: #{tpu_custom_call.1} parent=1 // pred_check
      _
    $region11: #{tpu_custom_call.1} parent=1 // pred_check_branch
      %29 = sbr.rel (0) target = $region13
    $region12: #{tpu_custom_call.1} parent=1 // pred_region
      %s31 = ssub.s32 256, 256
      %32 = vsyncadd [#allocation7], %s31
      %s33 = sshll.u32 [#allocation6], 4
      %s34 = int_to_ptr.vmem [resolvable:$true] %s33
      %39 = dma.hbm_to_vmem [thread:$0]  %s2, 256, %s34, [#allocation7], 128, 128, 8
    $region13: #{tpu_custom_call.1} parent=1 // pred_fallthru
      _
    // Predicated region
    $region14: #{tpu_custom_call.1} parent=1 // pred_check
      _
    $region15: #{tpu_custom_call.1} parent=1 // pred_check_branch
      %41 = sbr.rel (0) target = $region17
    $region16: #{tpu_custom_call.1} parent=1 // pred_region
      _
    $region17: #{tpu_custom_call.1} parent=1 // pred_fallthru
      _
    // Predicated region
    $region18: #{tpu_custom_call.1} parent=1 // pred_check
      _
    $region19: #{tpu_custom_call.1} parent=1 // pred_check_branch
      %43 = sbr.rel (0) target = $region21
    $region20: #{tpu_custom_call.1} parent=1 // pred_region
      _
    $region21: #{tpu_custom_call.1} parent=1 // pred_fallthru
      _
    // Predicated region
    $region22: #{tpu_custom_call.1} parent=1 // pred_check
      _
    $region23: #{tpu_custom_call.1} parent=1 // pred_check_branch
      %45 = sbr.rel (0) target = $region25
    $region24: #{tpu_custom_call.1} parent=1 // pred_region
      _
    $region25: #{tpu_custom_call.1} parent=1 // pred_fallthru
      _
    // Predicated region
    $region26: #{tpu_custom_call.1} parent=1 // pred_check
      _
    $region27: #{tpu_custom_call.1} parent=1 // pred_check_branch
      %47 = sbr.rel (0) target = $region29
    $region28: #{tpu_custom_call.1} parent=1 // pred_region
      _
    $region29: #{tpu_custom_call.1} parent=1 // pred_fallthru
      _
    // Predicated region
    $region30: #{tpu_custom_call.1} parent=1 // pred_check
      _
    $region31: #{tpu_custom_call.1} parent=1 // pred_check_branch
      %49 = sbr.rel (0) target = $region33
    $region32: #{tpu_custom_call.1} parent=1 // pred_region
      _
    $region33: #{tpu_custom_call.1} parent=1 // pred_fallthru
      _
    // Predicated region
    $region34: #{tpu_custom_call.1} parent=1 // pred_check
      _
    $region35: #{tpu_custom_call.1} parent=1 // pred_check_branch
      %51 = sbr.rel (0) target = $region37
    $region36: #{tpu_custom_call.1} parent=1 // pred_region
      %52 = dma.done [#allocation4], 32
    $region37: #{tpu_custom_call.1} parent=1 // pred_fallthru
      _
    // Predicated region
    $region38: #{tpu_custom_call.1} parent=1 // pred_check
      _
    $region39: #{tpu_custom_call.1} parent=1 // pred_check_branch
      %54 = sbr.rel (0) target = $region41
    $region40: #{tpu_custom_call.1} parent=1 // pred_region
      %55 = dma.done [#allocation7], 256
    $region41: #{tpu_custom_call.1} parent=1 // pred_fallthru
      _
    %v56 = vld [vmem:[#allocation3] sm:$0x3]
    %v57 = vld [vmem:[%s1] sm:$0x3]
    %v58 = vld [vmem:[%s4] sm:$0x3]
    %v59 = vld [vmem:[%s5] sm:$0x3]
    %v60 = vld [vmem:[%s6] sm:$0x1]
    %v61 = vld [vmem:[%s7] sm:$0x1]
    %v62 = vld [vmem:[#allocation6] sm:$0xff]
    %v63 = vld [vmem:[#allocation6 + $0x8] sm:$0xff]
    %65 = vset.pattern.permute.xlu0 0
    %66 = vperm.xlu0 %65, %v56
    %v67 = vpop.permute.xlu0 %66
    %v71 = vlaneseq
    %v72 = vshrl.u32 %v71, 7
    %v73 = vsub.s32 0, %v72
    %v74 = vrot.slane %v62, %v73
    %v75 = vlaneseq
    %v76 = vshrl.u32 %v75, 7
    %v77 = vsub.s32 4, %v76
    %v78 = vrot.slane %v62, %v77
    %v79 = vlaneseq
    %v80 = vshrl.u32 %v79, 7
    %v81 = vsub.s32 0, %v80
    %v82 = vrot.slane %v63, %v81
    %v83 = vlaneseq
    %v84 = vshrl.u32 %v83, 7
    %v85 = vsub.s32 4, %v84
    %v86 = vrot.slane %v63, %v85
    %vm87 = vcmask 1041409
    %v88 = vsel %vm87, %v82, %v74
    %v89 = vsel %vm87, %v86, %v78
    %v92 = vmul.f32 %v67, %v88
    %v93 = vmul.f32 %v67, %v89
    %94 = vset.pattern.permute.xlu0 1
    %95 = vperm.xlu0 %94, %v56
    %v96 = vpop.permute.xlu0 %95
    %v98 = vlaneseq
    %v99 = vshrl.u32 %v98, 7
    %v100 = vsub.s32 1, %v99
    %v101 = vrot.slane %v62, %v100
    %v102 = vlaneseq
    %v103 = vshrl.u32 %v102, 7
    %v104 = vsub.s32 5, %v103
    %v105 = vrot.slane %v62, %v104
    %v106 = vlaneseq
    %v107 = vshrl.u32 %v106, 7
    %v108 = vsub.s32 1, %v107
    %v109 = vrot.slane %v63, %v108
    %v110 = vlaneseq
    %v111 = vshrl.u32 %v110, 7
    %v112 = vsub.s32 5, %v111
    %v113 = vrot.slane %v63, %v112
    %v114 = vsel %vm87, %v109, %v101
    %v115 = vsel %vm87, %v113, %v105
    %v118 = vmul.f32 %v96, %v114
    %v119 = vmul.f32 %v96, %v115
    %v120 = vadd.f32 %v92, %v118
    %v121 = vadd.f32 %v93, %v119
    %122 = vset.pattern.permute.xlu0 2
    %123 = vperm.xlu0 %122, %v56
    %v124 = vpop.permute.xlu0 %123
    %v126 = vlaneseq
    %v127 = vshrl.u32 %v126, 7
    %v128 = vsub.s32 2, %v127
    %v129 = vrot.slane %v62, %v128
    %v130 = vlaneseq
    %v131 = vshrl.u32 %v130, 7
    %v132 = vsub.s32 6, %v131
    %v133 = vrot.slane %v62, %v132
    %v134 = vlaneseq
    %v135 = vshrl.u32 %v134, 7
    %v136 = vsub.s32 2, %v135
    %v137 = vrot.slane %v63, %v136
    %v138 = vlaneseq
    %v139 = vshrl.u32 %v138, 7
    %v140 = vsub.s32 6, %v139
    %v141 = vrot.slane %v63, %v140
    %v142 = vsel %vm87, %v137, %v129
    %v143 = vsel %vm87, %v141, %v133
    %v146 = vmul.f32 %v124, %v142
    %v147 = vmul.f32 %v124, %v143
    %v148 = vadd.f32 %v120, %v146
    %v149 = vadd.f32 %v121, %v147
    %150 = vset.pattern.permute.xlu0 3
    %151 = vperm.xlu0 %150, %v56
    %v152 = vpop.permute.xlu0 %151
    %v154 = vlaneseq
    %v155 = vshrl.u32 %v154, 7
    %v156 = vsub.s32 3, %v155
    %v157 = vrot.slane %v62, %v156
    %v158 = vlaneseq
    %v159 = vshrl.u32 %v158, 7
    %v160 = vsub.s32 7, %v159
    %v161 = vrot.slane %v62, %v160
    %v162 = vlaneseq
    %v163 = vshrl.u32 %v162, 7
    %v164 = vsub.s32 3, %v163
    %v165 = vrot.slane %v63, %v164
    %v166 = vlaneseq
    %v167 = vshrl.u32 %v166, 7
    %v168 = vsub.s32 7, %v167
    %v169 = vrot.slane %v63, %v168
    %v170 = vsel %vm87, %v165, %v157
    %v171 = vsel %vm87, %v169, %v161
    %v174 = vmul.f32 %v152, %v170
    %v175 = vmul.f32 %v152, %v171
    %v176 = vadd.f32 %v148, %v174
    %v177 = vadd.f32 %v149, %v175
    %v180 = vcombine.low %v176, %v177
    %v182 = vunpack.c.l.s4 1983009808
    %v183 = vunpack.c.0.s8 %v182
    %v184 = vlaneseq
    %v185 = vshrl.u32 %v184, 7
    %v186 = vsub.s32 %v183, %v185
    %v187 = vrot.slane %v180, %v186
    %189 = vst [vmem:[#allocation2] sm:$0xf] %v187
    %v190 = vld [vmem:[%s3] sm:$0xf]
    %v191 = vld [vmem:[%s3 + $0x4] sm:$0xf]
    %v194 = vrot.slane %v191, 7
    %v195 = vsel %vm87, %v194, %v190
    %v197 = vmul.f32 %v67, %v195
    %v198 = vrot.slane %v190, 1
    %v199 = vsel %vm87, %v191, %v198
    %v201 = vmul.f32 %v96, %v199
    %v202 = vadd.f32 %v197, %v201
    %v203 = vrot.slane %v190, 2
    %v204 = vrot.slane %v191, 1
    %v205 = vsel %vm87, %v204, %v203
    %v207 = vmul.f32 %v124, %v205
    %v208 = vadd.f32 %v202, %v207
    %v209 = vrot.slane %v190, 3
    %v210 = vrot.slane %v191, 2
    %v211 = vsel %vm87, %v210, %v209
    %v213 = vmul.f32 %v152, %v211
    %v214 = vadd.f32 %v208, %v213
    %v215 = vrcp.pop %v214
    %v216 = vlog2.pop %v214
    %v217 = vmul.f32 %v216, 0.6931472
    %vm218 = vcmask 123904
    %v219 = vsel %vm218, %v217, 0.0
    %220 = vadd.xlane.f32.xlu0 %v219
    %v221 = vpop.xlane.xlu0 %220
    %v222 = vsub.f32 %v58, %v57
    %v223 = vmul.f32 %v222, %v215
    %v224 = vmul.f32 %v223, %v223
    %v225 = vadd.f32 %v224, 0.0
    %v226 = vld [vmem:[#allocation2] sm:$0x3]
    %228 = vset.pattern.permute.xlu0 0
    %229 = vperm.xlu0 %228, %v223
    %v230 = vpop.permute.xlu0 %229
    %v232 = vmul.f32 %v226, %v230
    %v233 = vsub.f32 %v222, %v232
    %v234 = vmul.f32 %v233, %v215
    %v235 = vmul.f32 %v234, %v234
    %237 = vrot.lane.b32.xlu0 %v235, 127
    %v238 = vpop.permute.xlu0 %237
    %v240 = vadd.f32 %v225, %v238
    %242 = vset.pattern.permute.xlu0 1
    %243 = vperm.xlu0 %242, %v234
    %v244 = vpop.permute.xlu0 %243
    %v246 = vmul.f32 %v226, %v244
    %v249 = vunpack.c.l.s4 1983009808
    %v250 = vunpack.c.0.s8 %v249
    %v251 = vlaneseq
    %v252 = vshrl.u32 %v251, 7
    %v253 = vsub.s32 %v250, %v252
    %v254 = vrot.slane %v246, %v253
    %255 = vrot.lane.b32.xlu0 %v254, 112
    %v256 = vpop.permute.xlu0 %255
    %v258 = vsub.f32 %v233, %v256
    %v259 = vmul.f32 %v258, %v215
    %v260 = vmul.f32 %v259, %v259
    %262 = vrot.lane.b32.xlu0 %v260, 126
    %v263 = vpop.permute.xlu0 %262
    %v265 = vadd.f32 %v240, %v263
    %v266 = vld [vmem:[#allocation2] sm:$0x3]
    %268 = vset.pattern.permute.xlu0 2
    %269 = vperm.xlu0 %268, %v259
    %v270 = vpop.permute.xlu0 %269
    %v272 = vmul.f32 %v266, %v270
    %v275 = vunpack.c.l.s4 1983009808
    %v276 = vunpack.c.0.s8 %v275
    %v277 = vlaneseq
    %v278 = vshrl.u32 %v277, 7
    %v279 = vsub.s32 %v276, %v278
    %v280 = vrot.slane %v272, %v279
    %281 = vrot.lane.b32.xlu0 %v280, 96
    %v282 = vpop.permute.xlu0 %281
    %v284 = vsub.f32 %v258, %v282
    %v285 = vmul.f32 %v284, %v215
    %v286 = vmul.f32 %v285, %v285
    %288 = vrot.lane.b32.xlu0 %v286, 125
    %v289 = vpop.permute.xlu0 %288
    %v291 = vadd.f32 %v265, %v289
    %v292 = vld [vmem:[#allocation2] sm:$0x3]
    %294 = vset.pattern.permute.xlu0 3
    %295 = vperm.xlu0 %294, %v285
    %v296 = vpop.permute.xlu0 %295
    %v298 = vmul.f32 %v292, %v296
    %v301 = vunpack.c.l.s4 1983009808
    %v302 = vunpack.c.0.s8 %v301
    %v303 = vlaneseq
    %v304 = vshrl.u32 %v303, 7
    %v305 = vsub.s32 %v302, %v304
    %v306 = vrot.slane %v298, %v305
    %307 = vrot.lane.b32.xlu0 %v306, 80
    %v308 = vpop.permute.xlu0 %307
    %v310 = vsub.f32 %v284, %v308
    %v311 = vmul.f32 %v310, %v215
    %v312 = vmul.f32 %v311, %v311
    %314 = vrot.lane.b32.xlu0 %v312, 124
    %v315 = vpop.permute.xlu0 %314
    %v317 = vadd.f32 %v291, %v315
    %v318 = vld [vmem:[#allocation2] sm:$0x3]
    %320 = vset.pattern.permute.xlu0 4
    %321 = vperm.xlu0 %320, %v311
    %v322 = vpop.permute.xlu0 %321
    %v324 = vmul.f32 %v318, %v322
    %v327 = vunpack.c.l.s4 1983009808
    %v328 = vunpack.c.0.s8 %v327
    %v329 = vlaneseq
    %v330 = vshrl.u32 %v329, 7
    %v331 = vsub.s32 %v328, %v330
    %v332 = vrot.slane %v324, %v331
    %333 = vrot.lane.b32.xlu0 %v332, 64
    %v334 = vpop.permute.xlu0 %333
    %v336 = vsub.f32 %v310, %v334
    %v337 = vmul.f32 %v336, %v215
    %v338 = vmul.f32 %v337, %v337
    %340 = vrot.lane.b32.xlu0 %v338, 123
    %v341 = vpop.permute.xlu0 %340
    %v343 = vadd.f32 %v317, %v341
    %v344 = vld [vmem:[#allocation2] sm:$0x3]
    %346 = vset.pattern.permute.xlu0 5
    %347 = vperm.xlu0 %346, %v337
    %v348 = vpop.permute.xlu0 %347
    %v350 = vmul.f32 %v344, %v348
    %v353 = vunpack.c.l.s4 1983009808
    %v354 = vunpack.c.0.s8 %v353
    %v355 = vlaneseq
    %v356 = vshrl.u32 %v355, 7
    %v357 = vsub.s32 %v354, %v356
    %v358 = vrot.slane %v350, %v357
    %359 = vrot.lane.b32.xlu0 %v358, 48
    %v360 = vpop.permute.xlu0 %359
    %v362 = vsub.f32 %v336, %v360
    %v363 = vmul.f32 %v362, %v215
    %v364 = vmul.f32 %v363, %v363
    %366 = vrot.lane.b32.xlu0 %v364, 122
    %v367 = vpop.permute.xlu0 %366
    %v369 = vadd.f32 %v343, %v367
    %v370 = vld [vmem:[#allocation2] sm:$0x3]
    %372 = vset.pattern.permute.xlu0 6
    %373 = vperm.xlu0 %372, %v363
    %v374 = vpop.permute.xlu0 %373
    %v376 = vmul.f32 %v370, %v374
    %v379 = vunpack.c.l.s4 1983009808
    %v380 = vunpack.c.0.s8 %v379
    %v381 = vlaneseq
    %v382 = vshrl.u32 %v381, 7
    %v383 = vsub.s32 %v380, %v382
    %v384 = vrot.slane %v376, %v383
    %385 = vrot.lane.b32.xlu0 %v384, 32
    %v386 = vpop.permute.xlu0 %385
    %v388 = vsub.f32 %v362, %v386
    %v389 = vmul.f32 %v388, %v215
    %v390 = vmul.f32 %v389, %v389
    %392 = vrot.lane.b32.xlu0 %v390, 121
    %v393 = vpop.permute.xlu0 %392
    %v395 = vadd.f32 %v369, %v393
    %v396 = vld [vmem:[#allocation2] sm:$0x3]
    %398 = vset.pattern.permute.xlu0 7
    %399 = vperm.xlu0 %398, %v389
    %v400 = vpop.permute.xlu0 %399
    %v402 = vmul.f32 %v396, %v400
    %v405 = vunpack.c.l.s4 1983009808
    %v406 = vunpack.c.0.s8 %v405
    %v407 = vlaneseq
    %v408 = vshrl.u32 %v407, 7
    %v409 = vsub.s32 %v406, %v408
    %v410 = vrot.slane %v402, %v409
    %411 = vrot.lane.b32.xlu0 %v410, 16
    %v412 = vpop.permute.xlu0 %411
    %v414 = vsub.f32 %v388, %v412
    %v415 = vmul.f32 %v414, %v215
    %v416 = vmul.f32 %v415, %v415
    %418 = vrot.lane.b32.xlu0 %v416, 120
    %v419 = vpop.permute.xlu0 %418
    %v421 = vadd.f32 %v395, %v419
    %v422 = vld [vmem:[#allocation2 + $0x2] sm:$0x3]
    %424 = vset.pattern.permute.xlu0 8
    %425 = vperm.xlu0 %424, %v415
    %v426 = vpop.permute.xlu0 %425
    %v428 = vmul.f32 %v422, %v426
    %v429 = vsub.f32 %v414, %v428
    %v430 = vmul.f32 %v429, %v215
    %v431 = vmul.f32 %v430, %v430
    %433 = vrot.lane.b32.xlu0 %v431, 119
    %v434 = vpop.permute.xlu0 %433
    %v436 = vadd.f32 %v421, %v434
    %438 = vset.pattern.permute.xlu0 9
    %439 = vperm.xlu0 %438, %v430
    %v440 = vpop.permute.xlu0 %439
    %v442 = vmul.f32 %v422, %v440
    %v445 = vunpack.c.l.s4 1983009808
    %v446 = vunpack.c.0.s8 %v445
    %v447 = vlaneseq
    %v448 = vshrl.u32 %v447, 7
    %v449 = vsub.s32 %v446, %v448
    %v450 = vrot.slane %v442, %v449
    %451 = vrot.lane.b32.xlu0 %v450, 112
    %v452 = vpop.permute.xlu0 %451
    %v454 = vsub.f32 %v429, %v452
    %v455 = vmul.f32 %v454, %v215
    %v456 = vmul.f32 %v455, %v455
    %458 = vrot.lane.b32.xlu0 %v456, 118
    %v459 = vpop.permute.xlu0 %458
    %v461 = vadd.f32 %v436, %v459
    %v462 = vld [vmem:[#allocation2 + $0x2] sm:$0x3]
    %464 = vset.pattern.permute.xlu0 10
    %465 = vperm.xlu0 %464, %v455
    %v466 = vpop.permute.xlu0 %465
    %v468 = vmul.f32 %v462, %v466
    %v471 = vunpack.c.l.s4 1983009808
    %v472 = vunpack.c.0.s8 %v471
    %v473 = vlaneseq
    %v474 = vshrl.u32 %v473, 7
    %v475 = vsub.s32 %v472, %v474
    %v476 = vrot.slane %v468, %v475
    %477 = vrot.lane.b32.xlu0 %v476, 96
    %v478 = vpop.permute.xlu0 %477
    %v480 = vsub.f32 %v454, %v478
    %v481 = vmul.f32 %v480, %v215
    %v482 = vmul.f32 %v481, %v481
    %484 = vrot.lane.b32.xlu0 %v482, 117
    %v485 = vpop.permute.xlu0 %484
    %v487 = vadd.f32 %v461, %v485
    %v488 = vld [vmem:[#allocation2 + $0x2] sm:$0x3]
    %490 = vset.pattern.permute.xlu0 11
    %491 = vperm.xlu0 %490, %v481
    %v492 = vpop.permute.xlu0 %491
    %v494 = vmul.f32 %v488, %v492
    %v497 = vunpack.c.l.s4 1983009808
    %v498 = vunpack.c.0.s8 %v497
    %v499 = vlaneseq
    %v500 = vshrl.u32 %v499, 7
    %v501 = vsub.s32 %v498, %v500
    %v502 = vrot.slane %v494, %v501
    %503 = vrot.lane.b32.xlu0 %v502, 80
    %v504 = vpop.permute.xlu0 %503
    %v506 = vsub.f32 %v480, %v504
    %v507 = vmul.f32 %v506, %v215
    %v508 = vmul.f32 %v507, %v507
    %510 = vrot.lane.b32.xlu0 %v508, 116
    %v511 = vpop.permute.xlu0 %510
    %v513 = vadd.f32 %v487, %v511
    %v514 = vld [vmem:[#allocation2 + $0x2] sm:$0x3]
    %516 = vset.pattern.permute.xlu0 12
    %517 = vperm.xlu0 %516, %v507
    %v518 = vpop.permute.xlu0 %517
    %v520 = vmul.f32 %v514, %v518
    %v523 = vunpack.c.l.s4 1983009808
    %v524 = vunpack.c.0.s8 %v523
    %v525 = vlaneseq
    %v526 = vshrl.u32 %v525, 7
    %v527 = vsub.s32 %v524, %v526
    %v528 = vrot.slane %v520, %v527
    %529 = vrot.lane.b32.xlu0 %v528, 64
    %v530 = vpop.permute.xlu0 %529
    %v532 = vsub.f32 %v506, %v530
    %v533 = vmul.f32 %v532, %v215
    %v534 = vmul.f32 %v533, %v533
    %536 = vrot.lane.b32.xlu0 %v534, 115
    %v537 = vpop.permute.xlu0 %536
    %v539 = vadd.f32 %v513, %v537
    %v540 = vld [vmem:[#allocation2 + $0x2] sm:$0x3]
    %542 = vset.pattern.permute.xlu0 13
    %543 = vperm.xlu0 %542, %v533
    %v544 = vpop.permute.xlu0 %543
    %v546 = vmul.f32 %v540, %v544
    %v549 = vunpack.c.l.s4 1983009808
    %v550 = vunpack.c.0.s8 %v549
    %v551 = vlaneseq
    %v552 = vshrl.u32 %v551, 7
    %v553 = vsub.s32 %v550, %v552
    %v554 = vrot.slane %v546, %v553
    %555 = vrot.lane.b32.xlu0 %v554, 48
    %v556 = vpop.permute.xlu0 %555
    %v558 = vsub.f32 %v532, %v556
    %v559 = vmul.f32 %v558, %v215
    %v560 = vmul.f32 %v559, %v559
    %562 = vrot.lane.b32.xlu0 %v560, 114
    %v563 = vpop.permute.xlu0 %562
    %v565 = vadd.f32 %v539, %v563
    %v566 = vld [vmem:[#allocation2 + $0x2] sm:$0x3]
    %568 = vset.pattern.permute.xlu0 14
    %569 = vperm.xlu0 %568, %v559
    %v570 = vpop.permute.xlu0 %569
    %v572 = vmul.f32 %v566, %v570
    %v575 = vunpack.c.l.s4 1983009808
    %v576 = vunpack.c.0.s8 %v575
    %v577 = vlaneseq
    %v578 = vshrl.u32 %v577, 7
    %v579 = vsub.s32 %v576, %v578
    %v580 = vrot.slane %v572, %v579
    %581 = vrot.lane.b32.xlu0 %v580, 32
    %v582 = vpop.permute.xlu0 %581
    %v584 = vsub.f32 %v558, %v582
    %v585 = vmul.f32 %v584, %v215
    %v586 = vmul.f32 %v585, %v585
    %588 = vrot.lane.b32.xlu0 %v586, 113
    %v589 = vpop.permute.xlu0 %588
    %v591 = vadd.f32 %v565, %v589
    %v592 = vadd.f32 %v591, 29.406033
    %v593 = vmul.f32 %v592, -0.5
    %v594 = vsub.f32 %v593, %v221
    %v595 = vsub.f32 0.0, %v594
    %vm596 = vcmask 1024
    %v597 = vsel %vm596, %v595, 0.0
    %598 = vadd.xlane.f32.xlu0 %v597
    %v599 = vpop.xlane.xlu0 %598
    %v600 = vrot.slane %v599, 4
    %v601 = vadd.f32 %v599, %v600
    %v602 = vrot.slane %v601, 2
    %v603 = vadd.f32 %v601, %v602
    %v604 = vrot.slane %v603, 1
    %v605 = vadd.f32 %v603, %v604
    %s606 = vtos %v605
    %v607 = vstv %s606
    %v608 = vrcp.pop 2.0
    %v609 = vmul.f32 %v607, %v608
    %v611 = vlaneseq
    %v612 = vshrl.u32 %v611, 7
    %v613 = vsub.s32 0, %v612
    %v614 = vrot.slane %v61, %v613
    %v616 = vmul.f32 %v57, %v614
    %v618 = vlaneseq
    %v619 = vshrl.u32 %v618, 7
    %v620 = vsub.s32 0, %v619
    %v621 = vrot.slane %v60, %v620
    %v623 = vadd.f32 %v616, %v621
    %v624 = vsub.f32 %v623, %v59
    %v625 = vmul.f32 %v624, %v624
    %v626 = vsel %vm218, %v625, 0.0
    %627 = vadd.xlane.f32.xlu0 %v626
    %v628 = vpop.xlane.xlu0 %627
    %v629 = vrot.slane %v628, 4
    %v630 = vadd.f32 %v628, %v629
    %v631 = vrot.slane %v630, 2
    %v632 = vadd.f32 %v630, %v631
    %v633 = vrot.slane %v632, 1
    %v634 = vadd.f32 %v632, %v633
    %s635 = vtos %v634
    %v636 = vstv %s635
    %v637 = vrcp.pop 32.0
    %v638 = vmul.f32 %v636, %v637
    %v639 = vmul.f32 %v609, 0.1
    %v640 = vmul.f32 %v638, 0.1
    %v641 = vadd.f32 %v639, %v640
    %v642 = vlaneseq
    %v643 = vand.u32 %v642, 127
    %vm644 = vcmp.eq.s32.totalorder %v643, 0
    %v645 = vsel %vm644, %v641, 0.0
    %vm646 = vcmp.eq.s32.totalorder %v643, 1
    %v647 = vsel %vm646, %v609, %v645
    %vm648 = vcmp.eq.s32.totalorder %v643, 3
    %v649 = vsel %vm648, %v638, %v647
    %650 = vst [vmem:[#allocation8] sm:$0x1] %v649
    // Predicated region
    $region42: #{tpu_custom_call.1} parent=1 // pred_check
      _
    $region43: #{tpu_custom_call.1} parent=1 // pred_check_branch
      %652 = sbr.rel (0) target = $region45
    $region44: #{tpu_custom_call.1} parent=1 // pred_region
      %s654 = ssub.s32 16, 16
      %655 = vsyncadd [#allocation5], %s654
      %s657 = sshll.u32 [#allocation8], 4
      %s658 = int_to_ptr.vmem [resolvable:$true] %s657
      %660 = dma.vmem_to_hbm [thread:$0]  %s658, 16, %s8, [#allocation5]
    $region45: #{tpu_custom_call.1} parent=1 // pred_fallthru
      _
    // Predicated region
    $region46: #{tpu_custom_call.1} parent=1 // pred_check
      _
    $region47: #{tpu_custom_call.1} parent=1 // pred_check_branch
      %662 = sbr.rel (0) target = $region49
    $region48: #{tpu_custom_call.1} parent=1 // pred_region
      %663 = dma.done [#allocation5], 16
    $region49: #{tpu_custom_call.1} parent=1 // pred_fallthru
      _
    %664 = vsyncpa [#allocation4], 1
    %665 = vsyncpa [#allocation7], 1
    %666 = vsyncpa [#allocation5], 1

</llo_original>
